<compile_context>
chip_gen: v7x
topology: tpu7x:2x2x1
jax: 0.10.0
libtpu: 0.0.40
codegen_flags: <defaults>
</compile_context>

<pallas_src>
import functools

import numpy as np
import jax
import jax.numpy as jnp
from jax.experimental import pallas as pl
from jax.experimental.pallas import tpu as pltpu

TAU = 0.2
ALPHA_NEG = 0.8
ALPHA_POS = 0.0
EPS = 1e-8
GAMMA_EX = 2.0
GAMMA_IN = 1.6
DIM_MIXING = False
NORMALIZE = False
INTER_POS = False
EXTRA_NEG = False

_MIB = 2 ** 20


def _pick_tile(n, candidates, cap=None):
    """Largest candidate that divides n (and fits under `cap`), else full extent."""
    for c in candidates:
        if (cap is None or c <= cap) and n % c == 0:
            return c
    return n


def _vmem_limit(per_step_bytes):
    # Scoped-VMEM budget derived from the real per-step footprint (with
    # headroom), capped at 48 MiB so the same kernels also fit v7x's
    # 64 MiB/TC physical VMEM.
    return int(min(48 * _MIB, max(32 * _MIB, 2 * per_step_bytes)))


# ----------------------------------------------------------------------------
# Pallas kernel 1: L2 row-normalize, emit bf16 (native MXU dtype)
# ----------------------------------------------------------------------------
def _l2norm_kernel(x_ref, o_ref):
    x = x_ref[...].astype(jnp.float32)
    ssq = jnp.sum(x * x, axis=1, keepdims=True)
    # torch F.cosine_similarity clamps the norm at eps=1e-8:
    # rsqrt(max(ssq, 1e-16)) == 1 / max(||x||, 1e-8); rsqrt goes to the EUP.
    inv = jax.lax.rsqrt(jnp.maximum(ssq, 1e-16))
    o_ref[...] = (x * inv).astype(o_ref.dtype)


def l2_normalize_bf16(x):
    B, D = x.shape
    # Per step: double-buffered f32 input + bf16 output = 12 * tm * D bytes.
    cap = max(8, (24 * _MIB) // (12 * D))
    tm = _pick_tile(B, (1024, 512, 256, 128, 64, 32, 16, 8), cap=cap)
    per_step = 12 * tm * D
    return pl.pallas_call(
        _l2norm_kernel,
        out_shape=jax.ShapeDtypeStruct((B, D), jnp.bfloat16),
        grid=(B // tm,),
        in_specs=[pl.BlockSpec((tm, D), lambda i: (i, 0))],
        out_specs=pl.BlockSpec((tm, D), lambda i: (i, 0)),
        compiler_params=pltpu.CompilerParams(
            dimension_semantics=("parallel",),
            vmem_limit_bytes=_vmem_limit(per_step)),
    )(x)


# ----------------------------------------------------------------------------
# Pallas kernel 2: tiled Gram matrix (xn @ xn^T), bf16 MXU, f32 accumulation
# directly into the resident output tile (no scratch accumulator).
# ----------------------------------------------------------------------------
def _gram_kernel(a_ref, b_ref, o_ref):
    @pl.when(pl.program_id(2) == 0)
    def _():
        o_ref[...] = jnp.zeros_like(o_ref)

    # (tm, tk) x (tn, tk) contracting the feature axis -> (tm, tn) on the MXU.
    o_ref[...] += jax.lax.dot_general(
        a_ref[...], b_ref[...], (((1,), (1,)), ((), ())),
        preferred_element_type=jnp.float32)


def gram_matrix_pallas(xn):
    B, D = xn.shape
    # 512/256-multiple tiles feed the v6e/v7x 2x256^2 MXU with unmasked,
    # lane-dense stores; capped at 512 so per-step footprint stays well inside
    # v7x's 64 MiB/TC VMEM (also fine for v5e's 4x128^2 MXU).
    tm = _pick_tile(B, (512, 256, 128, 64, 32, 16, 8))
    tn = _pick_tile(B, (512, 256, 128, 64, 32, 16, 8))
    tk = _pick_tile(D, (512, 256, 128, 64, 32, 16, 8))
    # Double-buffered bf16 inputs + double-buffered f32 output tile.
    per_step = 2 * (tm * tk + tn * tk) * 2 + 2 * tm * tn * 4

    # TODO(synk): exploit Gram symmetry (triangular block grid via scalar
    # prefetch + XLU transpose of each tile to (j,i)) for ~2x fewer MXU flops.
    return pl.pallas_call(
        _gram_kernel,
        out_shape=jax.ShapeDtypeStruct((B, B), jnp.float32),
        grid=(B // tm, B // tn, D // tk),
        in_specs=[pl.BlockSpec((tm, tk), lambda i, j, k: (i, k)),
                  pl.BlockSpec((tn, tk), lambda i, j, k: (j, k))],
        out_specs=pl.BlockSpec((tm, tn), lambda i, j, k: (i, j)),
        compiler_params=pltpu.CompilerParams(
            dimension_semantics=("parallel", "parallel", "arbitrary"),
            vmem_limit_bytes=_vmem_limit(per_step)),
    )(xn, xn)


def cosine_sim_matrix(embeddings):
    # No host-side f32 cast: normalize kernel casts in-place, bf16 feeds the MXU.
    return gram_matrix_pallas(l2_normalize_bf16(embeddings))


# ----------------------------------------------------------------------------
# Pallas kernel 3: exp(sim/tau) row sums with the diagonal excluded.
# Row-tiled and pipelined (grid over row blocks), so it is HBM-roofline bound
# and scales to any B without holding B^2 in VMEM.
# ----------------------------------------------------------------------------
def _exp_rowsum_kernel(sim_ref, o_ref, *, inv_tau):
    tm = sim_ref.shape[0]
    i = pl.program_id(0)
    e = jnp.exp(sim_ref[...].astype(jnp.float32) * inv_tau)          # (tm, B)
    rowsum = jnp.sum(e, axis=1, keepdims=True)                        # (tm, 1)
    rows = i * tm + jax.lax.broadcasted_iota(jnp.int32, e.shape, 0)
    cols = jax.lax.broadcasted_iota(jnp.int32, e.shape, 1)
    diag = jnp.sum(jnp.where(rows == cols, e, 0.0), axis=1, keepdims=True)
    o_ref[...] = rowsum - diag


def exp_rowsums_nodiag(sim_matrix, tau):
    B = sim_matrix.shape[0]
    cap = max(8, (24 * _MIB) // (8 * B))          # 2 bufs * tm * B * 4 bytes
    tm = _pick_tile(B, (1024, 512, 256, 128, 64, 32, 16, 8), cap=cap)
    per_step = 2 * tm * B * 4
    kernel = functools.partial(_exp_rowsum_kernel, inv_tau=1.0 / float(tau))
    out = pl.pallas_call(
        kernel,
        out_shape=jax.ShapeDtypeStruct((B, 1), jnp.float32),
        grid=(B // tm,),
        in_specs=[pl.BlockSpec((tm, B), lambda i: (i, 0))],
        out_specs=pl.BlockSpec((tm, 1), lambda i: (i, 0)),
        compiler_params=pltpu.CompilerParams(
            dimension_semantics=("parallel",),
            vmem_limit_bytes=_vmem_limit(per_step)),
    )(sim_matrix)
    return out[:, 0]


def hcl_loss(sim_matrix, indices_i, indices_j, tau):
    """Non-filter HCL loss: Pallas exp/rowsum pass + O(P) subtract-form tail."""
    B = sim_matrix.shape[0]
    P = int(indices_i.shape[0])
    rowsum_nodiag = exp_rowsums_nodiag(sim_matrix, tau)               # (B,)

    # O(P) tail in plain JAX: gather the 2P pair entries once and subtract
    # them from the row sums — exact replacement for the (B,B) boolean mask as
    # long as masked positions are unique (standard usage: i != j, no
    # duplicated / reverse-duplicated pairs).
    pos_ij = jnp.exp(sim_matrix[indices_i, indices_j] / tau)
    pos_ji = jnp.exp(sim_matrix[indices_j, indices_i] / tau)
    sub = jnp.zeros((B,), jnp.float32).at[indices_i].add(pos_ij)
    sub = sub.at[indices_j].add(pos_ji)
    sum_neg = rowsum_nodiag - sub

    # -log(pos/(pos+neg)) == log(pos+neg) - log(pos): no divide needed.
    loss_ij = jnp.log(pos_ij + sum_neg[indices_i]) - jnp.log(pos_ij)
    loss_ji = jnp.log(pos_ji + sum_neg[indices_j]) - jnp.log(pos_ji)
    return (loss_ij + loss_ji).sum() / (2.0 * P)


# ----------------------------------------------------------------------------
# Plain-JAX glue mirroring HCLFT helper methods
# ----------------------------------------------------------------------------
def generate_negative_pairs(batch_size, positive_pairs_np):
    all_pairs = set((i, j) for i in range(batch_size) for j in range(batch_size) if i != j)
    pos_set = set((int(i), int(j)) for i, j in positive_pairs_np)
    neg = sorted(all_pairs - pos_set)  # deterministic order (torch set order is arbitrary)
    return np.array(neg, dtype=np.int32)


def transform_pairs(embeddings, pairs, gamma, transformation, key):
    # TODO(synk): .at[i].set with duplicate indices has unspecified write order
    # (same ambiguity exists in the PyTorch reference for overlapping pairs).
    D = embeddings.shape[1]
    size = D if DIM_MIXING else 1
    lam = jax.random.beta(key, gamma, gamma, shape=(size,), dtype=jnp.float32)
    if transformation == "ex":
        lam = lam + 1.0
    i = jnp.asarray(pairs[:, 0])
    j = jnp.asarray(pairs[:, 1])
    new_i = lam * embeddings[i] + (1.0 - lam) * embeddings[j]
    new_j = lam * embeddings[j] + (1.0 - lam) * embeddings[i]
    if NORMALIZE:
        new_i = new_i / jnp.maximum(jnp.linalg.norm(new_i, axis=1, keepdims=True), 1e-12)
        new_j = new_j / jnp.maximum(jnp.linalg.norm(new_j, axis=1, keepdims=True), 1e-12)
    processed = embeddings.at[i].set(new_i)
    processed = processed.at[j].set(new_j)
    return processed


def pairwise_cosine(a, b, eps=1e-8):
    """Row-wise cosine similarity between (P, D) blocks (O(P*D))."""
    a32 = a.astype(jnp.float32)
    b32 = b.astype(jnp.float32)
    na = jnp.maximum(jnp.linalg.norm(a32, axis=1), eps)
    nb = jnp.maximum(jnp.linalg.norm(b32, axis=1), eps)
    return jnp.sum(a32 * b32, axis=1) / (na * nb)


def compute_loss_filter_jax(sim_matrix, indices_i, indices_j):
    # TODO(synk): torch.quantile (sort-based) has no clean Pallas TPU
    # equivalent; the filter branch is kept in plain JAX.
    B = sim_matrix.shape[0]
    P = indices_i.shape[0]
    mask = jnp.eye(B, dtype=bool)
    mask = mask.at[indices_i, indices_j].set(True)
    mask = mask.at[indices_j, indices_i].set(True)
    exp_sim = jnp.exp(sim_matrix / TAU)
    exp_masked = jnp.where(mask, 0.0, exp_sim)
    pos_ij = exp_sim[indices_i, indices_j]
    pos_ji = exp_sim[indices_j, indices_i]
    neg_i = exp_masked[indices_i]
    neg_j = exp_masked[indices_j]
    th_neg_i = jnp.quantile(neg_i, ALPHA_NEG, axis=1, keepdims=True)
    th_neg_j = jnp.quantile(neg_j, ALPHA_NEG, axis=1, keepdims=True)
    hard_i = jnp.where(neg_i >= th_neg_i, neg_i, 0.0).sum(axis=1)
    hard_j = jnp.where(neg_j >= th_neg_j, neg_j, 0.0).sum(axis=1)
    th_pos_i = jnp.quantile(pos_ij, 1.0 - ALPHA_POS)
    th_pos_j = jnp.quantile(pos_ji, 1.0 - ALPHA_POS)
    pos_ij = jnp.where(pos_ij <= th_pos_i, pos_ij, 0.0)
    pos_ji = jnp.where(pos_ji <= th_pos_j, pos_ji, 0.0)
    loss_ij = -jnp.log((pos_ij + EPS) / (pos_ij + hard_i + EPS))
    loss_ji = -jnp.log((pos_ji + EPS) / (pos_ji + hard_j + EPS))
    return (loss_ij + loss_ji).sum() / (2.0 * P)


def hclft_forward(embeddings, positive_pairs_np, stage, key):
    """Replicates HCLFT.forward(embeddings, positive_pairs, stage)."""
    B = embeddings.shape[0]
    pi = jnp.asarray(positive_pairs_np[:, 0])
    pj = jnp.asarray(positive_pairs_np[:, 1])

    original_sim = cosine_sim_matrix(embeddings)

    key_ex, key_in = jax.random.split(key)

    # TODO(synk): the sequential .at[].set scatters are kept in plain JAX to
    # preserve the torch overwrite order exactly (the neg scatter overwrites
    # one-way-listed positive positions); fusing them into the loss kernel
    # would save ~B^2 HBM round trips.
    if GAMMA_EX:
        transformation = "ex" if not INTER_POS else "in"
        hard_pos_emb = transform_pairs(embeddings, positive_pairs_np, GAMMA_EX,
                                       transformation, key_ex)
        # Only the 2P (pi,pj)/(pj,pi) entries of hard_pos_sim are ever read ->
        # per-pair cosine on the processed rows (O(P*D)) instead of a full
        # B^2*D Gram pass; the value is symmetric so one dot covers both sides.
        hard_pos_vals = pairwise_cosine(hard_pos_emb[pi], hard_pos_emb[pj])
        original_sim = original_sim.at[pi, pj].set(hard_pos_vals)
        original_sim = original_sim.at[pj, pi].set(hard_pos_vals)

    if GAMMA_IN:
        transformation = "in" if not EXTRA_NEG else "ex"
        negative_pairs_np = generate_negative_pairs(B, positive_pairs_np)
        ni = jnp.asarray(negative_pairs_np[:, 0])
        nj = jnp.asarray(negative_pairs_np[:, 1])
        hard_neg_emb = transform_pairs(embeddings, negative_pairs_np, GAMMA_IN,
                                       transformation, key_in)
        # Negative pairs cover ~all off-diagonal positions, so the full Gram is
        # genuinely needed here.
        hard_neg_sim = cosine_sim_matrix(hard_neg_emb)
        original_sim = original_sim.at[ni, nj].set(hard_neg_sim[ni, nj])
        original_sim = original_sim.at[nj, ni].set(hard_neg_sim[nj, ni])

    if stage:  # should_filter=True -> quantile-based hard mining (plain JAX)
        return compute_loss_filter_jax(original_sim, pi, pj)
    else:      # should_filter=False -> Pallas exp/rowsum pass + O(P) tail
        return hcl_loss(original_sim, pi, pj, TAU)


if __name__ == "__main__":
    B, D = 8, 32
    key = jax.random.PRNGKey(0)
    k_emb, k_lambda = jax.random.split(key)
    embeddings = jax.random.normal(k_emb, (B, D), dtype=jnp.float32)
    positive_pairs = np.array([[0, 1], [2, 3], [4, 5], [6, 7]], dtype=np.int32)

    loss = hclft_forward(embeddings, positive_pairs, stage=False, key=k_lambda)
    loss = jax.block_until_ready(loss)
    assert np.isfinite(float(loss)), "non-filter loss is not finite"

    loss_f = hclft_forward(embeddings, positive_pairs, stage=True, key=k_lambda)
    loss_f = jax.block_until_ready(loss_f)
    assert np.isfinite(float(loss_f)), "filter loss is not finite"

    print("KERNEL_OK")
</pallas_src>

<mosaic_0001>
module attributes {stable_mosaic.version = 11 : i64} {
  func.func @_l2norm_kernel(%arg0: i32, %arg1: memref<8x32xf32, #tpu.memory_space<vmem>>, %arg2: memref<8x32xbf16, #tpu.memory_space<vmem>>) attributes {dimension_semantics = [#tpu.dimension_semantics<parallel>], iteration_bounds = array<i64: 1>, scalar_prefetch = 0 : i64, scratch_operands = 0 : i64, tpu.core_type = #tpu.core_type<tc>, window_params = [{transform_indices = @transform_0, window_bounds = array<i64: 8, 32>}, {transform_indices = @transform_1, window_bounds = array<i64: 8, 32>}]} {
    %c0 = arith.constant 0 : index
    %c0_0 = arith.constant 0 : index
    %0 = vector.load %arg1[%c0, %c0_0] : memref<8x32xf32, #tpu.memory_space<vmem>>, vector<8x32xf32>
    %1 = arith.mulf %0, %0 : vector<8x32xf32>
    %cst = arith.constant dense<0.000000e+00> : vector<8xf32>
    %2 = vector.multi_reduction <add>, %1, %cst [1] : vector<8x32xf32> to vector<8xf32>
    %3 = vector.shape_cast %2 : vector<8xf32> to vector<8x1xf32>
    %cst_1 = arith.constant 1.000000e-16 : f32
    %4 = vector.broadcast %cst_1 : f32 to vector<8x1xf32>
    %5 = arith.maximumf %3, %4 : vector<8x1xf32>
    %6 = math.rsqrt %5 : vector<8x1xf32>
    %7 = vector.broadcast %6 : vector<8x1xf32> to vector<8x32xf32>
    %8 = arith.mulf %0, %7 : vector<8x32xf32>
    %9 = arith.truncf %8 : vector<8x32xf32> to vector<8x32xbf16>
    %c0_2 = arith.constant 0 : index
    %c0_3 = arith.constant 0 : index
    %10 = vector.load %arg2[%c0_2, %c0_3] : memref<8x32xbf16, #tpu.memory_space<vmem>>, vector<8x32xbf16>
    tpu.vector_store %arg2[%c0_2, %c0_3], %9 {strides = array<i32>} : memref<8x32xbf16, #tpu.memory_space<vmem>>, vector<8x32xbf16>,
    return
  }
  func.func @transform_0(%arg0: i32) -> (i32, i32) {
    %c0_i32 = arith.constant 0 : i32
    %c0_i32_0 = arith.constant 0 : i32
    return %arg0, %c0_i32 : i32, i32
  }
  func.func @transform_1(%arg0: i32) -> (i32, i32) {
    %c0_i32 = arith.constant 0 : i32
    %c0_i32_0 = arith.constant 0 : i32
    return %arg0, %c0_i32 : i32, i32
  }
}

</mosaic_0001>

<llo_original>
// kernel: tpu_custom_call.1
$region0: #{tpu_custom_call.1}
  #allocation0 [shape = 'u32[]', space=smem, size = 0x4, offset = 0x4, fixed_abs, tag = 'smem constant byte address 0x4 - core index']
  #allocation1 [shape = 'u32[144,128]{1,0:T(1,128)}', space=vmem, size = 0x12000, scoped, tag = 'internal scratch']
  %s0 = inlined_call_operand.hbm [shape: f32[8,32], index: 0, kind: input, shape index: {}]
  %s1 = inlined_call_operand.hbm [shape: bf16[8,32], index: 1, kind: output, shape index: {}]
  %s2 = sld [smem:[#allocation0]]
  $region18: #{tpu_custom_call.1} parent=0
    _
  %s4 = ssub.s32 1, %s2
  %s5 = scalar_select 0, %s4, %s2
  $region1: #{tpu_custom_call.1} parent=0
    #allocation2 [shape = 'u8[4096]{0}', space=vmem, size = 0x1000, scoped, tag = 'input window, operand 0, single buffered']
    #allocation3 [shape = 's32[1]{0}', space=sflag, size = 0x4, scoped, tag = 'scoped memory for tpu_custom_call.1']
    #allocation4 [shape = 's32[1]{0}', space=sflag, size = 0x4, scoped, tag = 'scoped memory for tpu_custom_call.1']
    #allocation5 [shape = 'u8[2048]{0}', space=vmem, size = 0x800, scoped, tag = 'output window, operand 0, single buffered']
    %6 = vsyncpa [#allocation3], 0
    %7 = vsyncpa [#allocation4], 0
    // Predicated region
    $region2: #{tpu_custom_call.1} parent=1 // pred_check
      _
    $region3: #{tpu_custom_call.1} parent=1 // pred_check_branch
      %9 = sbr.rel (0) target = $region5
    $region4: #{tpu_custom_call.1} parent=1 // pred_region
      %s11 = ssub.s32 128, 128
      %12 = vsyncadd [#allocation3], %s11
      %s14 = sshll.u32 [#allocation2], 4
      %s15 = int_to_ptr.vmem [resolvable:$true] %s14
      %17 = dma.hbm_to_vmem [thread:$0]  %s0, 128, %s15, [#allocation3]
    $region5: #{tpu_custom_call.1} parent=1 // pred_fallthru
      _
    // Predicated region
    $region6: #{tpu_custom_call.1} parent=1 // pred_check
      _
    $region7: #{tpu_custom_call.1} parent=1 // pred_check_branch
      %19 = sbr.rel (0) target = $region9
    $region8: #{tpu_custom_call.1} parent=1 // pred_region
      %20 = dma.done [#allocation3], 128
    $region9: #{tpu_custom_call.1} parent=1 // pred_fallthru
      _
    %v21 = vld [vmem:[#allocation2] sm:$0xff]
    %v22 = vmul.f32 %v21, %v21
    %vm23 = vcmask 261120
    %v24 = vsel %vm23, %v22, 0.0
    %25 = vadd.xlane.f32.xlu0 %v24
    %v26 = vpop.xlane.xlu0 %25
    %v27 = vmax.f32 %v26, 1e-16
    %v28 = vrsqrt.pop %v27
    %v29 = vmul.f32 %v21, %v28
    %v30 = vpack.c.bf16 %v29, %v29
    %vm31 = vcmask 257024
    %32 = vst.msk [vmem:[#allocation5] sm:$0xf] %vm31, %v30
    // Predicated region
    $region10: #{tpu_custom_call.1} parent=1 // pred_check
      _
    $region11: #{tpu_custom_call.1} parent=1 // pred_check_branch
      %34 = sbr.rel (0) target = $region13
    $region12: #{tpu_custom_call.1} parent=1 // pred_region
      %s36 = ssub.s32 64, 64
      %37 = vsyncadd [#allocation4], %s36
      %s39 = sshll.u32 [#allocation5], 4
      %s40 = int_to_ptr.vmem [resolvable:$true] %s39
      %42 = dma.vmem_to_hbm [thread:$0]  %s40, 64, %s1, [#allocation4]
    $region13: #{tpu_custom_call.1} parent=1 // pred_fallthru
      _
    // Predicated region
    $region14: #{tpu_custom_call.1} parent=1 // pred_check
      _
    $region15: #{tpu_custom_call.1} parent=1 // pred_check_branch
      %44 = sbr.rel (0) target = $region17
    $region16: #{tpu_custom_call.1} parent=1 // pred_region
      %45 = dma.done [#allocation4], 64
    $region17: #{tpu_custom_call.1} parent=1 // pred_fallthru
      _
    %46 = vsyncpa [#allocation3], 1
    %47 = vsyncpa [#allocation4], 1

</llo_original>
